<compile_context>
chip_gen: v6e
topology: v6e:2x2x1
jax: 0.10.0
libtpu: 0.0.40
codegen_flags: <defaults>
</compile_context>

<pallas_src>
import jax
import jax.numpy as jnp
import numpy as np
from jax import lax
from jax.experimental import pallas as pl
from jax.experimental.pallas import tpu as pltpu

_OUT_ROWS = 8     # sublane-padded output rows: 0 = token, 1 = beam, 2 = score
_OUT_LANES = 128  # lane-dense output width (>= G)


def _beam_step_kernel(lp_ref, sums_ref, out_ref):
    """One beam_step: global top-G of (beam_logprobs_sum[q] + logprobs[q, v]).

    Ties are broken by smallest (q, v) instead of the reference's (rank, q)
    enumeration order — indistinguishable for non-degenerate float log-probs.
    """
    b = pl.program_id(0)
    _, G, V = lp_ref.shape

    lp = lp_ref[0].astype(jnp.float32)                      # (G, V)

    row = lax.broadcasted_iota(jnp.int32, (G, V), 0)
    col = lax.broadcasted_iota(jnp.int32, (G, V), 1)
    flat = row * 65536 + col            # (q << 16) | v ; decode with shift/mask

    # candidate[q, v] = beam_logprobs_sum[q] + logprobs[q, v]
    # sums live in SMEM: splat each scalar onto its row (cheap VPU selects).
    sums_bcast = jnp.zeros((G, V), jnp.float32)
    for q in range(G):
        sums_bcast = jnp.where(row == q, sums_ref[b, q], sums_bcast)
    cand = lp + sums_bcast

    out_row = lax.broadcasted_iota(jnp.int32, (_OUT_ROWS, _OUT_LANES), 0)
    out_lane = lax.broadcasted_iota(jnp.int32, (_OUT_ROWS, _OUT_LANES), 1)
    outbuf = jnp.zeros((_OUT_ROWS, _OUT_LANES), jnp.float32)

    sentinel = jnp.int32(2**31 - 1)
    work = cand
    for g in range(G):                                      # greedy top-G
        m = jnp.max(work)                                   # exact best score
        sel = jnp.min(jnp.where(work == m, flat, sentinel))  # its packed (q, v)
        q_sel = sel >> 16
        v_sel = sel & 0xFFFF
        work = jnp.where(flat == sel, -jnp.inf, work)       # drop exactly one entry
        hit = out_lane == g
        outbuf = jnp.where(hit & (out_row == 0), v_sel.astype(jnp.float32), outbuf)
        outbuf = jnp.where(hit & (out_row == 1), q_sel.astype(jnp.float32), outbuf)
        outbuf = jnp.where(hit & (out_row == 2), m, outbuf)

    out_ref[0] = outbuf                                     # single unmasked store


def beam_search_pallas(init_logprobs, beam_logprobs_sum=None):
    """Batched CaptionModel.beam_search beam_step.

    init_logprobs:       (B, G, V) float32/bfloat16 per-beam log-probs.
    beam_logprobs_sum:   (B, G) float32 running beam scores (defaults to zeros,
                         matching beam_logprobs_sum_table = torch.zeros(G)).
    Returns (tokens, beams, scores), each (B, G), sorted by descending score.
    """
    B, G, V = init_logprobs.shape
    assert G <= _OUT_LANES, "G must fit in one lane row"
    assert V < 65536, "vocab index must fit in 16 bits of the packed key"
    if beam_logprobs_sum is None:
        beam_logprobs_sum = jnp.zeros((B, G), jnp.float32)

    out = pl.pallas_call(
        _beam_step_kernel,
        out_shape=jax.ShapeDtypeStruct((B, _OUT_ROWS, _OUT_LANES), jnp.float32),
        grid=(B,),
        in_specs=[
            pl.BlockSpec((1, G, V), lambda b: (b, 0, 0)),
            pl.BlockSpec(memory_space=pltpu.MemorySpace.SMEM),
        ],
        out_specs=pl.BlockSpec((1, _OUT_ROWS, _OUT_LANES), lambda b: (b, 0, 0)),
        compiler_params=pltpu.CompilerParams(
            dimension_semantics=("parallel",)),
    )(init_logprobs, beam_logprobs_sum.astype(jnp.float32))

    tokens = out[:, 0, :G].astype(jnp.int32)
    beams = out[:, 1, :G].astype(jnp.int32)
    scores = out[:, 2, :G]
    return tokens, beams, scores


def _reference_beam_step(lp, G):
    """Pure-numpy replica of CaptionModel.beam_search's beam_step."""
    lp = np.asarray(lp, np.float32)
    ix = np.argsort(-lp, axis=1, kind="stable")
    ys = np.take_along_axis(lp, ix, axis=1)
    beam_sums = np.zeros(G, np.float32)
    cols = min(G, ys.shape[0])
    rows = G
    candidates = []
    for c in range(cols):
        for q in range(rows):
            candidates.append({"c": int(ix[q, c]), "q": q,
                               "p": float(beam_sums[q] + ys[q, c])})
    candidates = sorted(candidates, key=lambda x: -x["p"])  # stable
    return candidates[:G]


# TODO(synk): CaptionModel.forward's getattr-based mode dispatch and the
# multi-step beam loop / Python candidate bookkeeping stay host-side; only the
# per-step beam_step compute is a kernel (the reference itself runs one step
# with zero beam sums).

if __name__ == "__main__":
    B, G, V = 2, 8, 128
    key = jax.random.PRNGKey(0)
    logits = jax.random.normal(key, (B, G, V), jnp.float32)
    logprobs = jax.nn.log_softmax(logits, axis=-1)

    tok, beam, score = beam_search_pallas(logprobs)
    jax.block_until_ready((tok, beam, score))

    for b in range(B):
        ref = _reference_beam_step(np.asarray(logprobs[b]), G)
        ref_tok = np.array([c["c"] for c in ref], np.int32)
        ref_beam = np.array([c["q"] for c in ref], np.int32)
        ref_score = np.array([c["p"] for c in ref], np.float32)
        assert np.array_equal(np.asarray(tok[b]), ref_tok), (b, tok[b], ref_tok)
        assert np.array_equal(np.asarray(beam[b]), ref_beam), (b, beam[b], ref_beam)
        assert np.allclose(np.asarray(score[b]), ref_score, atol=1e-5), (
            b, score[b], ref_score)

    print("KERNEL_OK")
</pallas_src>

<mosaic_0001>
module attributes {stable_mosaic.version = 11 : i64} {
  func.func @_beam_step_kernel(%arg0: i32, %arg1: memref<1x8x128xf32, #tpu.memory_space<vmem>>, %arg2: memref<2x8xf32, #tpu.memory_space<smem>>, %arg3: memref<1x8x128xf32, #tpu.memory_space<vmem>>) attributes {dimension_semantics = [#tpu.dimension_semantics<parallel>], iteration_bounds = array<i64: 2>, scalar_prefetch = 0 : i64, scratch_operands = 0 : i64, tpu.core_type = #tpu.core_type<tc>, window_params = [{transform_indices = @transform_0, window_bounds = array<i64: 1, 8, 128>}, {transform_indices = @transform_1, window_bounds = array<i64: 2, 8>}, {transform_indices = @transform_2, window_bounds = array<i64: 1, 8, 128>}]} {
    %c0 = arith.constant 0 : index
    %c0_0 = arith.constant 0 : index
    %c0_1 = arith.constant 0 : index
    %0 = vector.load %arg1[%c0, %c0_0, %c0_1] : memref<1x8x128xf32, #tpu.memory_space<vmem>>, vector<1x8x128xf32>
    %1 = vector.shape_cast %0 : vector<1x8x128xf32> to vector<8x128xf32>
    %2 = tpu.iota {dimensions = array<i32: 0>} : vector<8x128xi32>
    %3 = tpu.iota {dimensions = array<i32: 1>} : vector<8x128xi32>
    %c65536_i32 = arith.constant 65536 : i32
    %4 = vector.broadcast %c65536_i32 : i32 to vector<8x128xi32>
    %5 = arith.muli %2, %4 : vector<8x128xi32>
    %6 = arith.addi %5, %3 : vector<8x128xi32>
    %cst = arith.constant 0.000000e+00 : f32
    %7 = vector.broadcast %cst : f32 to vector<8x128xf32>
    %c0_i32 = arith.constant 0 : i32
    %8 = vector.broadcast %c0_i32 : i32 to vector<8x128xi32>
    %9 = arith.cmpi eq, %2, %8 : vector<8x128xi32>
    %10 = arith.index_cast %arg0 : i32 to index
    %c0_2 = arith.constant 0 : index
    %11 = memref.load %arg2[%10, %c0_2] : memref<2x8xf32, #tpu.memory_space<smem>>
    %12 = vector.broadcast %11 : f32 to vector<8x128xf32>
    %13 = arith.select %9, %12, %7 : vector<8x128xi1>, vector<8x128xf32>
    %c1_i32 = arith.constant 1 : i32
    %14 = vector.broadcast %c1_i32 : i32 to vector<8x128xi32>
    %15 = arith.cmpi eq, %2, %14 : vector<8x128xi32>
    %16 = arith.index_cast %arg0 : i32 to index
    %c1 = arith.constant 1 : index
    %17 = memref.load %arg2[%16, %c1] : memref<2x8xf32, #tpu.memory_space<smem>>
    %18 = vector.broadcast %17 : f32 to vector<8x128xf32>
    %19 = arith.select %15, %18, %13 : vector<8x128xi1>, vector<8x128xf32>
    %c2_i32 = arith.constant 2 : i32
    %20 = vector.broadcast %c2_i32 : i32 to vector<8x128xi32>
    %21 = arith.cmpi eq, %2, %20 : vector<8x128xi32>
    %22 = arith.index_cast %arg0 : i32 to index
    %c2 = arith.constant 2 : index
    %23 = memref.load %arg2[%22, %c2] : memref<2x8xf32, #tpu.memory_space<smem>>
    %24 = vector.broadcast %23 : f32 to vector<8x128xf32>
    %25 = arith.select %21, %24, %19 : vector<8x128xi1>, vector<8x128xf32>
    %c3_i32 = arith.constant 3 : i32
    %26 = vector.broadcast %c3_i32 : i32 to vector<8x128xi32>
    %27 = arith.cmpi eq, %2, %26 : vector<8x128xi32>
    %28 = arith.index_cast %arg0 : i32 to index
    %c3 = arith.constant 3 : index
    %29 = memref.load %arg2[%28, %c3] : memref<2x8xf32, #tpu.memory_space<smem>>
    %30 = vector.broadcast %29 : f32 to vector<8x128xf32>
    %31 = arith.select %27, %30, %25 : vector<8x128xi1>, vector<8x128xf32>
    %c4_i32 = arith.constant 4 : i32
    %32 = vector.broadcast %c4_i32 : i32 to vector<8x128xi32>
    %33 = arith.cmpi eq, %2, %32 : vector<8x128xi32>
    %34 = arith.index_cast %arg0 : i32 to index
    %c4 = arith.constant 4 : index
    %35 = memref.load %arg2[%34, %c4] : memref<2x8xf32, #tpu.memory_space<smem>>
    %36 = vector.broadcast %35 : f32 to vector<8x128xf32>
    %37 = arith.select %33, %36, %31 : vector<8x128xi1>, vector<8x128xf32>
    %c5_i32 = arith.constant 5 : i32
    %38 = vector.broadcast %c5_i32 : i32 to vector<8x128xi32>
    %39 = arith.cmpi eq, %2, %38 : vector<8x128xi32>
    %40 = arith.index_cast %arg0 : i32 to index
    %c5 = arith.constant 5 : index
    %41 = memref.load %arg2[%40, %c5] : memref<2x8xf32, #tpu.memory_space<smem>>
    %42 = vector.broadcast %41 : f32 to vector<8x128xf32>
    %43 = arith.select %39, %42, %37 : vector<8x128xi1>, vector<8x128xf32>
    %c6_i32 = arith.constant 6 : i32
    %44 = vector.broadcast %c6_i32 : i32 to vector<8x128xi32>
    %45 = arith.cmpi eq, %2, %44 : vector<8x128xi32>
    %46 = arith.index_cast %arg0 : i32 to index
    %c6 = arith.constant 6 : index
    %47 = memref.load %arg2[%46, %c6] : memref<2x8xf32, #tpu.memory_space<smem>>
    %48 = vector.broadcast %47 : f32 to vector<8x128xf32>
    %49 = arith.select %45, %48, %43 : vector<8x128xi1>, vector<8x128xf32>
    %c7_i32 = arith.constant 7 : i32
    %50 = vector.broadcast %c7_i32 : i32 to vector<8x128xi32>
    %51 = arith.cmpi eq, %2, %50 : vector<8x128xi32>
    %52 = arith.index_cast %arg0 : i32 to index
    %c7 = arith.constant 7 : index
    %53 = memref.load %arg2[%52, %c7] : memref<2x8xf32, #tpu.memory_space<smem>>
    %54 = vector.broadcast %53 : f32 to vector<8x128xf32>
    %55 = arith.select %51, %54, %49 : vector<8x128xi1>, vector<8x128xf32>
    %56 = arith.addf %1, %55 : vector<8x128xf32>
    %57 = tpu.iota {dimensions = array<i32: 0>} : vector<8x128xi32>
    %58 = tpu.iota {dimensions = array<i32: 1>} : vector<8x128xi32>
    %cst_3 = arith.constant 0.000000e+00 : f32
    %59 = vector.broadcast %cst_3 : f32 to vector<8x128xf32>
    %60 = vector.shape_cast %56 : vector<8x128xf32> to vector<1x8x128xf32>
    %cst_4 = arith.constant dense<0xFF800000> : vector<1xf32>
    %61 = vector.multi_reduction <maximumf>, %60, %cst_4 [1, 2] : vector<1x8x128xf32> to vector<1xf32>
    %62 = vector.shape_cast %61 : vector<1xf32> to vector<1x1x1xf32>
    %63 = vector.extract %62[0, 0, 0] : f32 from vector<1x1x1xf32>
    %64 = vector.broadcast %63 : f32 to vector<8x128xf32>
    %65 = arith.cmpf oeq, %56, %64 : vector<8x128xf32>
    %c2147483647_i32 = arith.constant 2147483647 : i32
    %66 = vector.broadcast %c2147483647_i32 : i32 to vector<8x128xi32>
    %67 = arith.select %65, %6, %66 : vector<8x128xi1>, vector<8x128xi32>
    %68 = vector.shape_cast %67 : vector<8x128xi32> to vector<1x8x128xi32>
    %cst_5 = arith.constant dense<2147483647> : vector<1xi32>
    %69 = vector.multi_reduction <minsi>, %68, %cst_5 [1, 2] : vector<1x8x128xi32> to vector<1xi32>
    %70 = vector.shape_cast %69 : vector<1xi32> to vector<1x1x1xi32>
    %71 = vector.extract %70[0, 0, 0] : i32 from vector<1x1x1xi32>
    %c16_i32 = arith.constant 16 : i32
    %72 = arith.shrsi %71, %c16_i32 : i32
    %c65535_i32 = arith.constant 65535 : i32
    %73 = arith.andi %71, %c65535_i32 : i32
    %74 = vector.broadcast %71 : i32 to vector<8x128xi32>
    %75 = arith.cmpi eq, %6, %74 : vector<8x128xi32>
    %cst_6 = arith.constant 0xFF800000 : f32
    %76 = vector.broadcast %cst_6 : f32 to vector<8x128xf32>
    %77 = arith.select %75, %76, %56 : vector<8x128xi1>, vector<8x128xf32>
    %c0_i32_7 = arith.constant 0 : i32
    %78 = vector.broadcast %c0_i32_7 : i32 to vector<8x128xi32>
    %79 = arith.cmpi eq, %58, %78 : vector<8x128xi32>
    %c0_i32_8 = arith.constant 0 : i32
    %80 = vector.broadcast %c0_i32_8 : i32 to vector<8x128xi32>
    %81 = arith.cmpi eq, %57, %80 : vector<8x128xi32>
    %82 = arith.andi %79, %81 : vector<8x128xi1>
    %83 = arith.sitofp %73 : i32 to f32
    %84 = vector.broadcast %83 : f32 to vector<8x128xf32>
    %85 = arith.select %82, %84, %59 : vector<8x128xi1>, vector<8x128xf32>
    %c1_i32_9 = arith.constant 1 : i32
    %86 = vector.broadcast %c1_i32_9 : i32 to vector<8x128xi32>
    %87 = arith.cmpi eq, %57, %86 : vector<8x128xi32>
    %88 = arith.andi %79, %87 : vector<8x128xi1>
    %89 = arith.sitofp %72 : i32 to f32
    %90 = vector.broadcast %89 : f32 to vector<8x128xf32>
    %91 = arith.select %88, %90, %85 : vector<8x128xi1>, vector<8x128xf32>
    %c2_i32_10 = arith.constant 2 : i32
    %92 = vector.broadcast %c2_i32_10 : i32 to vector<8x128xi32>
    %93 = arith.cmpi eq, %57, %92 : vector<8x128xi32>
    %94 = arith.andi %79, %93 : vector<8x128xi1>
    %95 = vector.broadcast %63 : f32 to vector<8x128xf32>
    %96 = arith.select %94, %95, %91 : vector<8x128xi1>, vector<8x128xf32>
    %97 = vector.shape_cast %77 : vector<8x128xf32> to vector<1x8x128xf32>
    %cst_11 = arith.constant dense<0xFF800000> : vector<1xf32>
    %98 = vector.multi_reduction <maximumf>, %97, %cst_11 [1, 2] : vector<1x8x128xf32> to vector<1xf32>
    %99 = vector.shape_cast %98 : vector<1xf32> to vector<1x1x1xf32>
    %100 = vector.extract %99[0, 0, 0] : f32 from vector<1x1x1xf32>
    %101 = vector.broadcast %100 : f32 to vector<8x128xf32>
    %102 = arith.cmpf oeq, %77, %101 : vector<8x128xf32>
    %c2147483647_i32_12 = arith.constant 2147483647 : i32
    %103 = vector.broadcast %c2147483647_i32_12 : i32 to vector<8x128xi32>
    %104 = arith.select %102, %6, %103 : vector<8x128xi1>, vector<8x128xi32>
    %105 = vector.shape_cast %104 : vector<8x128xi32> to vector<1x8x128xi32>
    %cst_13 = arith.constant dense<2147483647> : vector<1xi32>
    %106 = vector.multi_reduction <minsi>, %105, %cst_13 [1, 2] : vector<1x8x128xi32> to vector<1xi32>
    %107 = vector.shape_cast %106 : vector<1xi32> to vector<1x1x1xi32>
    %108 = vector.extract %107[0, 0, 0] : i32 from vector<1x1x1xi32>
    %c16_i32_14 = arith.constant 16 : i32
    %109 = arith.shrsi %108, %c16_i32_14 : i32
    %c65535_i32_15 = arith.constant 65535 : i32
    %110 = arith.andi %108, %c65535_i32_15 : i32
    %111 = vector.broadcast %108 : i32 to vector<8x128xi32>
    %112 = arith.cmpi eq, %6, %111 : vector<8x128xi32>
    %cst_16 = arith.constant 0xFF800000 : f32
    %113 = vector.broadcast %cst_16 : f32 to vector<8x128xf32>
    %114 = arith.select %112, %113, %77 : vector<8x128xi1>, vector<8x128xf32>
    %c1_i32_17 = arith.constant 1 : i32
    %115 = vector.broadcast %c1_i32_17 : i32 to vector<8x128xi32>
    %116 = arith.cmpi eq, %58, %115 : vector<8x128xi32>
    %c0_i32_18 = arith.constant 0 : i32
    %117 = vector.broadcast %c0_i32_18 : i32 to vector<8x128xi32>
    %118 = arith.cmpi eq, %57, %117 : vector<8x128xi32>
    %119 = arith.andi %116, %118 : vector<8x128xi1>
    %120 = arith.sitofp %110 : i32 to f32
    %121 = vector.broadcast %120 : f32 to vector<8x128xf32>
    %122 = arith.select %119, %121, %96 : vector<8x128xi1>, vector<8x128xf32>
    %c1_i32_19 = arith.constant 1 : i32
    %123 = vector.broadcast %c1_i32_19 : i32 to vector<8x128xi32>
    %124 = arith.cmpi eq, %57, %123 : vector<8x128xi32>
    %125 = arith.andi %116, %124 : vector<8x128xi1>
    %126 = arith.sitofp %109 : i32 to f32
    %127 = vector.broadcast %126 : f32 to vector<8x128xf32>
    %128 = arith.select %125, %127, %122 : vector<8x128xi1>, vector<8x128xf32>
    %c2_i32_20 = arith.constant 2 : i32
    %129 = vector.broadcast %c2_i32_20 : i32 to vector<8x128xi32>
    %130 = arith.cmpi eq, %57, %129 : vector<8x128xi32>
    %131 = arith.andi %116, %130 : vector<8x128xi1>
    %132 = vector.broadcast %100 : f32 to vector<8x128xf32>
    %133 = arith.select %131, %132, %128 : vector<8x128xi1>, vector<8x128xf32>
    %134 = vector.shape_cast %114 : vector<8x128xf32> to vector<1x8x128xf32>
    %cst_21 = arith.constant dense<0xFF800000> : vector<1xf32>
    %135 = vector.multi_reduction <maximumf>, %134, %cst_21 [1, 2] : vector<1x8x128xf32> to vector<1xf32>
    %136 = vector.shape_cast %135 : vector<1xf32> to vector<1x1x1xf32>
    %137 = vector.extract %136[0, 0, 0] : f32 from vector<1x1x1xf32>
    %138 = vector.broadcast %137 : f32 to vector<8x128xf32>
    %139 = arith.cmpf oeq, %114, %138 : vector<8x128xf32>
    %c2147483647_i32_22 = arith.constant 2147483647 : i32
    %140 = vector.broadcast %c2147483647_i32_22 : i32 to vector<8x128xi32>
    %141 = arith.select %139, %6, %140 : vector<8x128xi1>, vector<8x128xi32>
    %142 = vector.shape_cast %141 : vector<8x128xi32> to vector<1x8x128xi32>
    %cst_23 = arith.constant dense<2147483647> : vector<1xi32>
    %143 = vector.multi_reduction <minsi>, %142, %cst_23 [1, 2] : vector<1x8x128xi32> to vector<1xi32>
    %144 = vector.shape_cast %143 : vector<1xi32> to vector<1x1x1xi32>
    %145 = vector.extract %144[0, 0, 0] : i32 from vector<1x1x1xi32>
    %c16_i32_24 = arith.constant 16 : i32
    %146 = arith.shrsi %145, %c16_i32_24 : i32
    %c65535_i32_25 = arith.constant 65535 : i32
    %147 = arith.andi %145, %c65535_i32_25 : i32
    %148 = vector.broadcast %145 : i32 to vector<8x128xi32>
    %149 = arith.cmpi eq, %6, %148 : vector<8x128xi32>
    %cst_26 = arith.constant 0xFF800000 : f32
    %150 = vector.broadcast %cst_26 : f32 to vector<8x128xf32>
    %151 = arith.select %149, %150, %114 : vector<8x128xi1>, vector<8x128xf32>
    %c2_i32_27 = arith.constant 2 : i32
    %152 = vector.broadcast %c2_i32_27 : i32 to vector<8x128xi32>
    %153 = arith.cmpi eq, %58, %152 : vector<8x128xi32>
    %c0_i32_28 = arith.constant 0 : i32
    %154 = vector.broadcast %c0_i32_28 : i32 to vector<8x128xi32>
    %155 = arith.cmpi eq, %57, %154 : vector<8x128xi32>
    %156 = arith.andi %153, %155 : vector<8x128xi1>
    %157 = arith.sitofp %147 : i32 to f32
    %158 = vector.broadcast %157 : f32 to vector<8x128xf32>
    %159 = arith.select %156, %158, %133 : vector<8x128xi1>, vector<8x128xf32>
    %c1_i32_29 = arith.constant 1 : i32
    %160 = vector.broadcast %c1_i32_29 : i32 to vector<8x128xi32>
    %161 = arith.cmpi eq, %57, %160 : vector<8x128xi32>
    %162 = arith.andi %153, %161 : vector<8x128xi1>
    %163 = arith.sitofp %146 : i32 to f32
    %164 = vector.broadcast %163 : f32 to vector<8x128xf32>
    %165 = arith.select %162, %164, %159 : vector<8x128xi1>, vector<8x128xf32>
    %c2_i32_30 = arith.constant 2 : i32
    %166 = vector.broadcast %c2_i32_30 : i32 to vector<8x128xi32>
    %167 = arith.cmpi eq, %57, %166 : vector<8x128xi32>
    %168 = arith.andi %153, %167 : vector<8x128xi1>
    %169 = vector.broadcast %137 : f32 to vector<8x128xf32>
    %170 = arith.select %168, %169, %165 : vector<8x128xi1>, vector<8x128xf32>
    %171 = vector.shape_cast %151 : vector<8x128xf32> to vector<1x8x128xf32>
    %cst_31 = arith.constant dense<0xFF800000> : vector<1xf32>
    %172 = vector.multi_reduction <maximumf>, %171, %cst_31 [1, 2] : vector<1x8x128xf32> to vector<1xf32>
    %173 = vector.shape_cast %172 : vector<1xf32> to vector<1x1x1xf32>
    %174 = vector.extract %173[0, 0, 0] : f32 from vector<1x1x1xf32>
    %175 = vector.broadcast %174 : f32 to vector<8x128xf32>
    %176 = arith.cmpf oeq, %151, %175 : vector<8x128xf32>
    %c2147483647_i32_32 = arith.constant 2147483647 : i32
    %177 = vector.broadcast %c2147483647_i32_32 : i32 to vector<8x128xi32>
    %178 = arith.select %176, %6, %177 : vector<8x128xi1>, vector<8x128xi32>
    %179 = vector.shape_cast %178 : vector<8x128xi32> to vector<1x8x128xi32>
    %cst_33 = arith.constant dense<2147483647> : vector<1xi32>
    %180 = vector.multi_reduction <minsi>, %179, %cst_33 [1, 2] : vector<1x8x128xi32> to vector<1xi32>
    %181 = vector.shape_cast %180 : vector<1xi32> to vector<1x1x1xi32>
    %182 = vector.extract %181[0, 0, 0] : i32 from vector<1x1x1xi32>
    %c16_i32_34 = arith.constant 16 : i32
    %183 = arith.shrsi %182, %c16_i32_34 : i32
    %c65535_i32_35 = arith.constant 65535 : i32
    %184 = arith.andi %182, %c65535_i32_35 : i32
    %185 = vector.broadcast %182 : i32 to vector<8x128xi32>
    %186 = arith.cmpi eq, %6, %185 : vector<8x128xi32>
    %cst_36 = arith.constant 0xFF800000 : f32
    %187 = vector.broadcast %cst_36 : f32 to vector<8x128xf32>
    %188 = arith.select %186, %187, %151 : vector<8x128xi1>, vector<8x128xf32>
    %c3_i32_37 = arith.constant 3 : i32
    %189 = vector.broadcast %c3_i32_37 : i32 to vector<8x128xi32>
    %190 = arith.cmpi eq, %58, %189 : vector<8x128xi32>
    %c0_i32_38 = arith.constant 0 : i32
    %191 = vector.broadcast %c0_i32_38 : i32 to vector<8x128xi32>
    %192 = arith.cmpi eq, %57, %191 : vector<8x128xi32>
    %193 = arith.andi %190, %192 : vector<8x128xi1>
    %194 = arith.sitofp %184 : i32 to f32
    %195 = vector.broadcast %194 : f32 to vector<8x128xf32>
    %196 = arith.select %193, %195, %170 : vector<8x128xi1>, vector<8x128xf32>
    %c1_i32_39 = arith.constant 1 : i32
    %197 = vector.broadcast %c1_i32_39 : i32 to vector<8x128xi32>
    %198 = arith.cmpi eq, %57, %197 : vector<8x128xi32>
    %199 = arith.andi %190, %198 : vector<8x128xi1>
    %200 = arith.sitofp %183 : i32 to f32
    %201 = vector.broadcast %200 : f32 to vector<8x128xf32>
    %202 = arith.select %199, %201, %196 : vector<8x128xi1>, vector<8x128xf32>
    %c2_i32_40 = arith.constant 2 : i32
    %203 = vector.broadcast %c2_i32_40 : i32 to vector<8x128xi32>
    %204 = arith.cmpi eq, %57, %203 : vector<8x128xi32>
    %205 = arith.andi %190, %204 : vector<8x128xi1>
    %206 = vector.broadcast %174 : f32 to vector<8x128xf32>
    %207 = arith.select %205, %206, %202 : vector<8x128xi1>, vector<8x128xf32>
    %208 = vector.shape_cast %188 : vector<8x128xf32> to vector<1x8x128xf32>
    %cst_41 = arith.constant dense<0xFF800000> : vector<1xf32>
    %209 = vector.multi_reduction <maximumf>, %208, %cst_41 [1, 2] : vector<1x8x128xf32> to vector<1xf32>
    %210 = vector.shape_cast %209 : vector<1xf32> to vector<1x1x1xf32>
    %211 = vector.extract %210[0, 0, 0] : f32 from vector<1x1x1xf32>
    %212 = vector.broadcast %211 : f32 to vector<8x128xf32>
    %213 = arith.cmpf oeq, %188, %212 : vector<8x128xf32>
    %c2147483647_i32_42 = arith.constant 2147483647 : i32
    %214 = vector.broadcast %c2147483647_i32_42 : i32 to vector<8x128xi32>
    %215 = arith.select %213, %6, %214 : vector<8x128xi1>, vector<8x128xi32>
    %216 = vector.shape_cast %215 : vector<8x128xi32> to vector<1x8x128xi32>
    %cst_43 = arith.constant dense<2147483647> : vector<1xi32>
    %217 = vector.multi_reduction <minsi>, %216, %cst_43 [1, 2] : vector<1x8x128xi32> to vector<1xi32>
    %218 = vector.shape_cast %217 : vector<1xi32> to vector<1x1x1xi32>
    %219 = vector.extract %218[0, 0, 0] : i32 from vector<1x1x1xi32>
    %c16_i32_44 = arith.constant 16 : i32
    %220 = arith.shrsi %219, %c16_i32_44 : i32
    %c65535_i32_45 = arith.constant 65535 : i32
    %221 = arith.andi %219, %c65535_i32_45 : i32
    %222 = vector.broadcast %219 : i32 to vector<8x128xi32>
    %223 = arith.cmpi eq, %6, %222 : vector<8x128xi32>
    %cst_46 = arith.constant 0xFF800000 : f32
    %224 = vector.broadcast %cst_46 : f32 to vector<8x128xf32>
    %225 = arith.select %223, %224, %188 : vector<8x128xi1>, vector<8x128xf32>
    %c4_i32_47 = arith.constant 4 : i32
    %226 = vector.broadcast %c4_i32_47 : i32 to vector<8x128xi32>
    %227 = arith.cmpi eq, %58, %226 : vector<8x128xi32>
    %c0_i32_48 = arith.constant 0 : i32
    %228 = vector.broadcast %c0_i32_48 : i32 to vector<8x128xi32>
    %229 = arith.cmpi eq, %57, %228 : vector<8x128xi32>
    %230 = arith.andi %227, %229 : vector<8x128xi1>
    %231 = arith.sitofp %221 : i32 to f32
    %232 = vector.broadcast %231 : f32 to vector<8x128xf32>
    %233 = arith.select %230, %232, %207 : vector<8x128xi1>, vector<8x128xf32>
    %c1_i32_49 = arith.constant 1 : i32
    %234 = vector.broadcast %c1_i32_49 : i32 to vector<8x128xi32>
    %235 = arith.cmpi eq, %57, %234 : vector<8x128xi32>
    %236 = arith.andi %227, %235 : vector<8x128xi1>
    %237 = arith.sitofp %220 : i32 to f32
    %238 = vector.broadcast %237 : f32 to vector<8x128xf32>
    %239 = arith.select %236, %238, %233 : vector<8x128xi1>, vector<8x128xf32>
    %c2_i32_50 = arith.constant 2 : i32
    %240 = vector.broadcast %c2_i32_50 : i32 to vector<8x128xi32>
    %241 = arith.cmpi eq, %57, %240 : vector<8x128xi32>
    %242 = arith.andi %227, %241 : vector<8x128xi1>
    %243 = vector.broadcast %211 : f32 to vector<8x128xf32>
    %244 = arith.select %242, %243, %239 : vector<8x128xi1>, vector<8x128xf32>
    %245 = vector.shape_cast %225 : vector<8x128xf32> to vector<1x8x128xf32>
    %cst_51 = arith.constant dense<0xFF800000> : vector<1xf32>
    %246 = vector.multi_reduction <maximumf>, %245, %cst_51 [1, 2] : vector<1x8x128xf32> to vector<1xf32>
    %247 = vector.shape_cast %246 : vector<1xf32> to vector<1x1x1xf32>
    %248 = vector.extract %247[0, 0, 0] : f32 from vector<1x1x1xf32>
    %249 = vector.broadcast %248 : f32 to vector<8x128xf32>
    %250 = arith.cmpf oeq, %225, %249 : vector<8x128xf32>
    %c2147483647_i32_52 = arith.constant 2147483647 : i32
    %251 = vector.broadcast %c2147483647_i32_52 : i32 to vector<8x128xi32>
    %252 = arith.select %250, %6, %251 : vector<8x128xi1>, vector<8x128xi32>
    %253 = vector.shape_cast %252 : vector<8x128xi32> to vector<1x8x128xi32>
    %cst_53 = arith.constant dense<2147483647> : vector<1xi32>
    %254 = vector.multi_reduction <minsi>, %253, %cst_53 [1, 2] : vector<1x8x128xi32> to vector<1xi32>
    %255 = vector.shape_cast %254 : vector<1xi32> to vector<1x1x1xi32>
    %256 = vector.extract %255[0, 0, 0] : i32 from vector<1x1x1xi32>
    %c16_i32_54 = arith.constant 16 : i32
    %257 = arith.shrsi %256, %c16_i32_54 : i32
    %c65535_i32_55 = arith.constant 65535 : i32
    %258 = arith.andi %256, %c65535_i32_55 : i32
    %259 = vector.broadcast %256 : i32 to vector<8x128xi32>
    %260 = arith.cmpi eq, %6, %259 : vector<8x128xi32>
    %cst_56 = arith.constant 0xFF800000 : f32
    %261 = vector.broadcast %cst_56 : f32 to vector<8x128xf32>
    %262 = arith.select %260, %261, %225 : vector<8x128xi1>, vector<8x128xf32>
    %c5_i32_57 = arith.constant 5 : i32
    %263 = vector.broadcast %c5_i32_57 : i32 to vector<8x128xi32>
    %264 = arith.cmpi eq, %58, %263 : vector<8x128xi32>
    %c0_i32_58 = arith.constant 0 : i32
    %265 = vector.broadcast %c0_i32_58 : i32 to vector<8x128xi32>
    %266 = arith.cmpi eq, %57, %265 : vector<8x128xi32>
    %267 = arith.andi %264, %266 : vector<8x128xi1>
    %268 = arith.sitofp %258 : i32 to f32
    %269 = vector.broadcast %268 : f32 to vector<8x128xf32>
    %270 = arith.select %267, %269, %244 : vector<8x128xi1>, vector<8x128xf32>
    %c1_i32_59 = arith.constant 1 : i32
    %271 = vector.broadcast %c1_i32_59 : i32 to vector<8x128xi32>
    %272 = arith.cmpi eq, %57, %271 : vector<8x128xi32>
    %273 = arith.andi %264, %272 : vector<8x128xi1>
    %274 = arith.sitofp %257 : i32 to f32
    %275 = vector.broadcast %274 : f32 to vector<8x128xf32>
    %276 = arith.select %273, %275, %270 : vector<8x128xi1>, vector<8x128xf32>
    %c2_i32_60 = arith.constant 2 : i32
    %277 = vector.broadcast %c2_i32_60 : i32 to vector<8x128xi32>
    %278 = arith.cmpi eq, %57, %277 : vector<8x128xi32>
    %279 = arith.andi %264, %278 : vector<8x128xi1>
    %280 = vector.broadcast %248 : f32 to vector<8x128xf32>
    %281 = arith.select %279, %280, %276 : vector<8x128xi1>, vector<8x128xf32>
    %282 = vector.shape_cast %262 : vector<8x128xf32> to vector<1x8x128xf32>
    %cst_61 = arith.constant dense<0xFF800000> : vector<1xf32>
    %283 = vector.multi_reduction <maximumf>, %282, %cst_61 [1, 2] : vector<1x8x128xf32> to vector<1xf32>
    %284 = vector.shape_cast %283 : vector<1xf32> to vector<1x1x1xf32>
    %285 = vector.extract %284[0, 0, 0] : f32 from vector<1x1x1xf32>
    %286 = vector.broadcast %285 : f32 to vector<8x128xf32>
    %287 = arith.cmpf oeq, %262, %286 : vector<8x128xf32>
    %c2147483647_i32_62 = arith.constant 2147483647 : i32
    %288 = vector.broadcast %c2147483647_i32_62 : i32 to vector<8x128xi32>
    %289 = arith.select %287, %6, %288 : vector<8x128xi1>, vector<8x128xi32>
    %290 = vector.shape_cast %289 : vector<8x128xi32> to vector<1x8x128xi32>
    %cst_63 = arith.constant dense<2147483647> : vector<1xi32>
    %291 = vector.multi_reduction <minsi>, %290, %cst_63 [1, 2] : vector<1x8x128xi32> to vector<1xi32>
    %292 = vector.shape_cast %291 : vector<1xi32> to vector<1x1x1xi32>
    %293 = vector.extract %292[0, 0, 0] : i32 from vector<1x1x1xi32>
    %c16_i32_64 = arith.constant 16 : i32
    %294 = arith.shrsi %293, %c16_i32_64 : i32
    %c65535_i32_65 = arith.constant 65535 : i32
    %295 = arith.andi %293, %c65535_i32_65 : i32
    %296 = vector.broadcast %293 : i32 to vector<8x128xi32>
    %297 = arith.cmpi eq, %6, %296 : vector<8x128xi32>
    %cst_66 = arith.constant 0xFF800000 : f32
    %298 = vector.broadcast %cst_66 : f32 to vector<8x128xf32>
    %299 = arith.select %297, %298, %262 : vector<8x128xi1>, vector<8x128xf32>
    %c6_i32_67 = arith.constant 6 : i32
    %300 = vector.broadcast %c6_i32_67 : i32 to vector<8x128xi32>
    %301 = arith.cmpi eq, %58, %300 : vector<8x128xi32>
    %c0_i32_68 = arith.constant 0 : i32
    %302 = vector.broadcast %c0_i32_68 : i32 to vector<8x128xi32>
    %303 = arith.cmpi eq, %57, %302 : vector<8x128xi32>
    %304 = arith.andi %301, %303 : vector<8x128xi1>
    %305 = arith.sitofp %295 : i32 to f32
    %306 = vector.broadcast %305 : f32 to vector<8x128xf32>
    %307 = arith.select %304, %306, %281 : vector<8x128xi1>, vector<8x128xf32>
    %c1_i32_69 = arith.constant 1 : i32
    %308 = vector.broadcast %c1_i32_69 : i32 to vector<8x128xi32>
    %309 = arith.cmpi eq, %57, %308 : vector<8x128xi32>
    %310 = arith.andi %301, %309 : vector<8x128xi1>
    %311 = arith.sitofp %294 : i32 to f32
    %312 = vector.broadcast %311 : f32 to vector<8x128xf32>
    %313 = arith.select %310, %312, %307 : vector<8x128xi1>, vector<8x128xf32>
    %c2_i32_70 = arith.constant 2 : i32
    %314 = vector.broadcast %c2_i32_70 : i32 to vector<8x128xi32>
    %315 = arith.cmpi eq, %57, %314 : vector<8x128xi32>
    %316 = arith.andi %301, %315 : vector<8x128xi1>
    %317 = vector.broadcast %285 : f32 to vector<8x128xf32>
    %318 = arith.select %316, %317, %313 : vector<8x128xi1>, vector<8x128xf32>
    %319 = vector.shape_cast %299 : vector<8x128xf32> to vector<1x8x128xf32>
    %cst_71 = arith.constant dense<0xFF800000> : vector<1xf32>
    %320 = vector.multi_reduction <maximumf>, %319, %cst_71 [1, 2] : vector<1x8x128xf32> to vector<1xf32>
    %321 = vector.shape_cast %320 : vector<1xf32> to vector<1x1x1xf32>
    %322 = vector.extract %321[0, 0, 0] : f32 from vector<1x1x1xf32>
    %323 = vector.broadcast %322 : f32 to vector<8x128xf32>
    %324 = arith.cmpf oeq, %299, %323 : vector<8x128xf32>
    %c2147483647_i32_72 = arith.constant 2147483647 : i32
    %325 = vector.broadcast %c2147483647_i32_72 : i32 to vector<8x128xi32>
    %326 = arith.select %324, %6, %325 : vector<8x128xi1>, vector<8x128xi32>
    %327 = vector.shape_cast %326 : vector<8x128xi32> to vector<1x8x128xi32>
    %cst_73 = arith.constant dense<2147483647> : vector<1xi32>
    %328 = vector.multi_reduction <minsi>, %327, %cst_73 [1, 2] : vector<1x8x128xi32> to vector<1xi32>
    %329 = vector.shape_cast %328 : vector<1xi32> to vector<1x1x1xi32>
    %330 = vector.extract %329[0, 0, 0] : i32 from vector<1x1x1xi32>
    %c16_i32_74 = arith.constant 16 : i32
    %331 = arith.shrsi %330, %c16_i32_74 : i32
    %c65535_i32_75 = arith.constant 65535 : i32
    %332 = arith.andi %330, %c65535_i32_75 : i32
    %c7_i32_76 = arith.constant 7 : i32
    %333 = vector.broadcast %c7_i32_76 : i32 to vector<8x128xi32>
    %334 = arith.cmpi eq, %58, %333 : vector<8x128xi32>
    %c0_i32_77 = arith.constant 0 : i32
    %335 = vector.broadcast %c0_i32_77 : i32 to vector<8x128xi32>
    %336 = arith.cmpi eq, %57, %335 : vector<8x128xi32>
    %337 = arith.andi %334, %336 : vector<8x128xi1>
    %338 = arith.sitofp %332 : i32 to f32
    %339 = vector.broadcast %338 : f32 to vector<8x128xf32>
    %340 = arith.select %337, %339, %318 : vector<8x128xi1>, vector<8x128xf32>
    %c1_i32_78 = arith.constant 1 : i32
    %341 = vector.broadcast %c1_i32_78 : i32 to vector<8x128xi32>
    %342 = arith.cmpi eq, %57, %341 : vector<8x128xi32>
    %343 = arith.andi %334, %342 : vector<8x128xi1>
    %344 = arith.sitofp %331 : i32 to f32
    %345 = vector.broadcast %344 : f32 to vector<8x128xf32>
    %346 = arith.select %343, %345, %340 : vector<8x128xi1>, vector<8x128xf32>
    %c2_i32_79 = arith.constant 2 : i32
    %347 = vector.broadcast %c2_i32_79 : i32 to vector<8x128xi32>
    %348 = arith.cmpi eq, %57, %347 : vector<8x128xi32>
    %349 = arith.andi %334, %348 : vector<8x128xi1>
    %350 = vector.broadcast %322 : f32 to vector<8x128xf32>
    %351 = arith.select %349, %350, %346 : vector<8x128xi1>, vector<8x128xf32>
    %c0_80 = arith.constant 0 : index
    %c0_81 = arith.constant 0 : index
    %c0_82 = arith.constant 0 : index
    %352 = vector.load %arg3[%c0_80, %c0_81, %c0_82] : memref<1x8x128xf32, #tpu.memory_space<vmem>>, vector<1x8x128xf32>
    %353 = vector.shape_cast %352 : vector<1x8x128xf32> to vector<8x128xf32>
    %354 = vector.shape_cast %351 : vector<8x128xf32> to vector<1x8x128xf32>
    tpu.vector_store %arg3[%c0_80, %c0_81, %c0_82], %354 {strides = array<i32>} : memref<1x8x128xf32, #tpu.memory_space<vmem>>, vector<1x8x128xf32>,
    return
  }
  func.func @transform_0(%arg0: i32) -> (i32, i32, i32) {
    %c0_i32 = arith.constant 0 : i32
    %c0_i32_0 = arith.constant 0 : i32
    %c0_i32_1 = arith.constant 0 : i32
    return %arg0, %c0_i32, %c0_i32_0 : i32, i32, i32
  }
  func.func @transform_1(%arg0: i32) -> (i32, i32) {
    %c0_i32 = arith.constant 0 : i32
    %c0_i32_0 = arith.constant 0 : i32
    %c0_i32_1 = arith.constant 0 : i32
    return %c0_i32, %c0_i32_0 : i32, i32
  }
  func.func @transform_2(%arg0: i32) -> (i32, i32, i32) {
    %c0_i32 = arith.constant 0 : i32
    %c0_i32_0 = arith.constant 0 : i32
    %c0_i32_1 = arith.constant 0 : i32
    return %arg0, %c0_i32, %c0_i32_0 : i32, i32, i32
  }
}

</mosaic_0001>

<llo_original>
// kernel: tpu_custom_call.1
$region0: #{tpu_custom_call.1}
  #allocation0 [shape = 'u32[]', space=smem, size = 0x4, offset = 0x4, fixed_abs, tag = 'smem constant byte address 0x4 - core index']
  #allocation1 [shape = 'u32[144,128]{1,0:T(1,128)}', space=vmem, size = 0x12000, scoped, tag = 'internal scratch']
  %s0 = inlined_call_operand.hbm [shape: f32[2,8,128], index: 0, kind: input, shape index: {}]
  %s1 = inlined_call_operand.hbm [shape: f32[2,8], index: 1, kind: input, shape index: {}]
  %s2 = inlined_call_operand.hbm [shape: f32[2,8,128], index: 2, kind: output, shape index: {}]
  %s3 = sld [smem:[#allocation0]]
  $region49: #{tpu_custom_call.1} parent=0
    _
  %s5 = ssub.s32 1, %s3
  %s6 = scalar_select 0, %s5, %s3
  $region1: #{tpu_custom_call.1} parent=0
    #allocation2 [shape = 'u8[8192]{0}', space=vmem, size = 0x2000, scoped, tag = 'input window, operand 0']
    #allocation3 [shape = 's32[2]{0}', space=sflag, size = 0x8, scoped, tag = 'scoped memory for tpu_custom_call.1']
    #allocation4 [shape = 's32[2]{0}', space=sflag, size = 0x8, scoped, tag = 'scoped memory for tpu_custom_call.1']
    #allocation5 [shape = 's32[2]{0}', space=sflag, size = 0x8, scoped, tag = 'scoped memory for tpu_custom_call.1']
    #allocation6 [shape = 'u8[1024]{0}', space=smem, size = 0x400, scoped, tag = 'input window, operand 1, single buffered']
    #allocation7 [shape = 'u8[8192]{0}', space=vmem, size = 0x2000, scoped, tag = 'output window, operand 0']
    %7 = vsyncpa [#allocation3], 0
    %s8 = scalar_lea.sflag [#allocation3], 1
    %9 = vsyncpa %s8, 0
    %10 = vsyncpa [#allocation5], 0
    %11 = vsyncpa [#allocation4], 0
    %s12 = scalar_lea.sflag [#allocation4], 1
    %13 = vsyncpa %s12, 0
    loop: start=0, step=1, limit=4
    $region2: #{tpu_custom_call.1} parent=1 // loop_pre_header
      _
    $region3: #{tpu_custom_call.1} parent=1 // loop_header
      %s15 = sphi 0, %s19
      %p16 = scmp.ge.s32.totalorder %s15, 4
      %s25 = sphi 0, %s27
      %s28 = sphi 0, %s25
      %s29 = sphi 0, %s28
      %s45 = sphi 0, %s29
      %s49 = sphi 0, %s49
      %s51 = sphi 0, %s49
      %s52 = sphi 0, %s51
      %s66 = sphi 0, %s52
      %s72 = sphi 0, %s74
      %s75 = sphi 0, %s72
      %s76 = sphi 0, %s75
      %s92 = sphi 0, %s76
    $region4: #{tpu_custom_call.1} parent=1 // loop_header_branch
      %18 = sbr.rel (%p16) target = $region8
    $region5: #{tpu_custom_call.1} parent=1 // loop_body
      %s20 = ssub.s32 %s15, 1
      %s21 = ssub.s32 %s15, 2
      %s22 = sadd.s32 %s15, 1
      %s23 = ssub.s32 %s15, %s22
      %p24 = scmp.eq.s32.totalorder %s23, 0
      %s26 = sadd.s32 %s25, 1
      %s27 = scalar_select %p24, %s25, %s26
      %p30 = pneg %p24
      %p31 = scmp.eq.s32.totalorder %s15, 1
      %p32 = por %p30, %p31
      %p33 = scmp.ne.s32.totalorder %s25, %s28
      %p34 = scmp.eq.s32.totalorder %s15, 0
      %p35 = por %p33, %p34
      %p36 = scmp.ne.s32.totalorder %s25, %s28
      %p37 = scmp.eq.s32.totalorder %s20, 1
      %p38 = por %p36, %p37
      %p39 = scmp.ne.s32.totalorder %s28, %s29
      %p40 = scmp.eq.s32.totalorder %s20, 0
      %p41 = por %p39, %p40
      %p42 = scmp.ne.s32.totalorder %s28, %s29
      %p43 = scmp.eq.s32.totalorder %s21, 1
      %p44 = por %p42, %p43
      %p46 = scmp.ne.s32.totalorder %s29, %s45
      %p47 = scmp.eq.s32.totalorder %s21, 0
      %p48 = por %p46, %p47
      %s50 = sadd.s32 %s49, 1
      %p53 = scmp.eq.s32.totalorder %s15, 1
      %p54 = scmp.ne.s32.totalorder %s49, %s51
      %p55 = scmp.eq.s32.totalorder %s15, 0
      %p56 = por %p54, %p55
      %p57 = scmp.ne.s32.totalorder %s49, %s51
      %p58 = scmp.eq.s32.totalorder %s20, 1
      %p59 = por %p57, %p58
      %p60 = scmp.ne.s32.totalorder %s51, %s52
      %p61 = scmp.eq.s32.totalorder %s20, 0
      %p62 = por %p60, %p61
      %p63 = scmp.ne.s32.totalorder %s51, %s52
      %p64 = scmp.eq.s32.totalorder %s21, 1
      %p65 = por %p63, %p64
      %p67 = scmp.ne.s32.totalorder %s52, %s66
      %p68 = scmp.eq.s32.totalorder %s21, 0
      %p69 = por %p67, %p68
      %s70 = ssub.s32 %s15, %s22
      %p71 = scmp.eq.s32.totalorder %s70, 0
      %s73 = sadd.s32 %s72, 1
      %s74 = scalar_select %p71, %s72, %s73
      %p77 = pneg %p71
      %p78 = scmp.eq.s32.totalorder %s15, 1
      %p79 = por %p77, %p78
      %p80 = scmp.ne.s32.totalorder %s72, %s75
      %p81 = scmp.eq.s32.totalorder %s15, 0
      %p82 = por %p80, %p81
      %p83 = scmp.ne.s32.totalorder %s72, %s75
      %p84 = scmp.eq.s32.totalorder %s20, 1
      %p85 = por %p83, %p84
      %p86 = scmp.ne.s32.totalorder %s75, %s76
      %p87 = scmp.eq.s32.totalorder %s20, 0
      %p88 = por %p86, %p87
      %p89 = scmp.ne.s32.totalorder %s75, %s76
      %p90 = scmp.eq.s32.totalorder %s21, 1
      %p91 = por %p89, %p90
      %p93 = scmp.ne.s32.totalorder %s76, %s92
      %p94 = scmp.eq.s32.totalorder %s21, 0
      %p95 = por %p93, %p94
      %p96 = scmp.le.s32.totalorder 1, %s15
      %p97 = scmp.lt.s32.totalorder %s15, 3
      %p98 = pnand %p96, %p97
      %p99 = pneg %p98
      // Predicated region
      $region9: #{tpu_custom_call.1} parent=5 // pred_check
        _
      $region10: #{tpu_custom_call.1} parent=5 // pred_check_branch
        %101 = sbr.rel (%p98) target = $region12
      $region11: #{tpu_custom_call.1} parent=5 // pred_region
        %s102 = ssub.s32 %s15, 1
        // Predicated region
        $region13: #{tpu_custom_call.1} parent=11 // pred_check
          %p103 = pneg %p62
        $region14: #{tpu_custom_call.1} parent=11 // pred_check_branch
          %105 = sbr.rel (%p103) target = $region16
        $region15: #{tpu_custom_call.1} parent=11 // pred_region
          %s107 = ssub.s32 32, 32
          %108 = vsyncadd [#allocation5], %s107
          %111 = dma.hbm_to_smem %s1, 32, [#allocation6], [#allocation5]
        $region16: #{tpu_custom_call.1} parent=11 // pred_fallthru
          _
      $region12: #{tpu_custom_call.1} parent=5 // pred_fallthru
        _
      %p112 = scmp.lt.s32.totalorder %s15, 2
      // Predicated region
      $region17: #{tpu_custom_call.1} parent=5 // pred_check
        %p113 = pneg %p112
      $region18: #{tpu_custom_call.1} parent=5 // pred_check_branch
        %115 = sbr.rel (%p113) target = $region20
      $region19: #{tpu_custom_call.1} parent=5 // pred_region
        // Predicated region
        $region21: #{tpu_custom_call.1} parent=19 // pred_check
          %p116 = pneg %p35
        $region22: #{tpu_custom_call.1} parent=19 // pred_check_branch
          %118 = sbr.rel (%p116) target = $region24
        $region23: #{tpu_custom_call.1} parent=19 // pred_region
          %s119 = sand.u32 %s25, 1
          %s120 = scalar_lea.sflag [#allocation3], %s119
          %s121 = sand.u32 %s25, 1
          %s122 = smul.addr %s121, 8
          %s123 = scalar_lea.vmem [#allocation2], %s122
          %s125 = ssub.s32 128, 128
          %126 = vsyncadd %s120, %s125
          %s127 = smul.addr %s15, 128
          %s128 = scalar_lea.hbm %s0, %s127
          %s130 = sshll.u32 %s123, 4
          %s131 = int_to_ptr.vmem [resolvable:$true] %s130
          %133 = dma.hbm_to_vmem [thread:$0]  %s128, 128, %s131, %s120
        $region24: #{tpu_custom_call.1} parent=19 // pred_fallthru
          _
      $region20: #{tpu_custom_call.1} parent=5 // pred_fallthru
        _
      %p134 = scmp.le.s32.totalorder 1, %s15
      %p135 = scmp.lt.s32.totalorder %s15, 3
      %p136 = pnand %p134, %p135
      %p137 = pneg %p136
      // Predicated region
      $region25: #{tpu_custom_call.1} parent=5 // pred_check
        _
      $region26: #{tpu_custom_call.1} parent=5 // pred_check_branch
        %139 = sbr.rel (%p136) target = $region28
      $region27: #{tpu_custom_call.1} parent=5 // pred_region
        %s140 = ssub.s32 %s15, 1
        %s141 = sand.u32 %s28, 1
        %s142 = scalar_lea.sflag [#allocation3], %s141
        %s143 = sand.u32 %s28, 1
        %s144 = smul.addr %s143, 8
        %s145 = scalar_lea.vmem [#allocation2], %s144
        // Predicated region
        $region29: #{tpu_custom_call.1} parent=27 // pred_check
          %p146 = pneg %p41
        $region30: #{tpu_custom_call.1} parent=27 // pred_check_branch
          %148 = sbr.rel (%p146) target = $region32
        $region31: #{tpu_custom_call.1} parent=27 // pred_region
          %149 = dma.done %s142, 128
        $region32: #{tpu_custom_call.1} parent=27 // pred_fallthru
          _
        // Predicated region
        $region33: #{tpu_custom_call.1} parent=27 // pred_check
          %p150 = pneg %p62
        $region34: #{tpu_custom_call.1} parent=27 // pred_check_branch
          %152 = sbr.rel (%p150) target = $region36
        $region35: #{tpu_custom_call.1} parent=27 // pred_region
          %153 = dma.done [#allocation5], 32
        $region36: #{tpu_custom_call.1} parent=27 // pred_fallthru
          _
        %154 = sfence
        %s155 = sand.u32 %s28, 1
        %s156 = scalar_lea.sflag [#allocation3], %s155
        %s157 = sand.u32 %s28, 1
        %s158 = smul.addr %s157, 8
        %s159 = scalar_lea.vmem [#allocation2], %s158
        %p160 = pneg %p41
        %p161 = pneg %p38
        %p162 = pneg %p62
        %p163 = pneg %p59
        %p164 = pneg %p88
        %p165 = pneg %p85
        %s166 = sand.u32 %s75, 1
        %s167 = scalar_lea.sflag [#allocation4], %s166
        %s168 = sand.u32 %s75, 1
        %s169 = smul.addr %s168, 8
        %s170 = scalar_lea.vmem [#allocation7], %s169
        %v171 = vld [vmem:[%s145] sm:$0xff]
        %v172 = vlaneseq
        %v173 = vshrl.u32 %v172, 7
        %v174 = vlaneseq
        %v175 = vand.u32 %v174, 127
        %v176 = vmul.u32 %v173, 65536
        %v177 = vadd.s32 %v176, %v175
        %vm178 = vcmp.eq.s32.totalorder %v173, 0
        %s179 = smul.u32 %s20, 128
        %s180 = sld [smem:[#allocation6 + %s179]]
        %v181 = vstv %s180
        %v182 = vsel %vm178, %v181, 0.0
        %vm183 = vcmp.eq.s32.totalorder %v173, 1
        %s184 = sadd.s32 %s179, 1
        %s185 = sld [smem:[#allocation6 + %s184]]
        %v186 = vstv %s185
        %v187 = vsel %vm183, %v186, %v182
        %vm188 = vcmp.eq.s32.totalorder %v173, 2
        %s189 = sadd.s32 %s179, 2
        %s190 = sld [smem:[#allocation6 + %s189]]
        %v191 = vstv %s190
        %v192 = vsel %vm188, %v191, %v187
        %vm193 = vcmp.eq.s32.totalorder %v173, 3
        %s194 = sadd.s32 %s179, 3
        %s195 = sld [smem:[#allocation6 + %s194]]
        %v196 = vstv %s195
        %v197 = vsel %vm193, %v196, %v192
        %vm198 = vcmp.eq.s32.totalorder %v173, 4
        %s199 = sadd.s32 %s179, 4
        %s200 = sld [smem:[#allocation6 + %s199]]
        %v201 = vstv %s200
        %v202 = vsel %vm198, %v201, %v197
        %vm203 = vcmp.eq.s32.totalorder %v173, 5
        %s204 = sadd.s32 %s179, 5
        %s205 = sld [smem:[#allocation6 + %s204]]
        %v206 = vstv %s205
        %v207 = vsel %vm203, %v206, %v202
        %vm208 = vcmp.eq.s32.totalorder %v173, 6
        %s209 = sadd.s32 %s179, 6
        %s210 = sld [smem:[#allocation6 + %s209]]
        %v211 = vstv %s210
        %v212 = vsel %vm208, %v211, %v207
        %vm213 = vcmp.eq.s32.totalorder %v173, 7
        %s214 = sadd.s32 %s179, 7
        %s215 = sld [smem:[#allocation6 + %s214]]
        %v216 = vstv %s215
        %v217 = vsel %vm213, %v216, %v212
        %v218 = vadd.f32 %v171, %v217
        %219 = vmax.xlane.f32.xlu0 %v218
        %v220 = vpop.xlane.xlu0 %219
        %v221 = vrot.slane %v220, 4
        %v222 = vmax.f32 %v220, %v221
        %v223 = vrot.slane %v222, 2
        %v224 = vmax.f32 %v222, %v223
        %v225 = vrot.slane %v224, 1
        %v226 = vmax.f32 %v224, %v225
        %s227 = vtos %v226
        %v228 = vstv %s227
        %vm229 = vcmp.eq.f32.partialorder %v218, %v228
        %v230 = vsel %vm229, %v177, 2147483647
        %v231 = vand.u32 %v230, 65535
        %v232 = vshra.s32 %v230, 16
        %v233 = vcvt.s32.f32 %v231
        %v234 = vcvt.s32.f32 %v232
        %235 = vmin.xlane.f32.xlu0 %v234
        %v236 = vpop.xlane.xlu0 %235
        %vm237 = vcmp.eq.f32.partialorder %v234, %v236
        %v238 = vsel %vm237, %v233, inf
        %239 = vmin.xlane.f32.xlu0 %v238
        %v240 = vpop.xlane.xlu0 %239
        %v241 = vcvt.f32.s32 %v240
        %v242 = vcvt.f32.s32 %v236
        %v243 = vshll.u32 %v242, 16
        %v244 = vadd.s32 %v243, %v241
        %v245 = vrot.slane %v244, 4
        %vm246 = vcmp.lt.s32.totalorder %v244, %v245
        %v247 = vsel %vm246, %v244, %v245
        %v248 = vrot.slane %v247, 2
        %vm249 = vcmp.lt.s32.totalorder %v247, %v248
        %v250 = vsel %vm249, %v247, %v248
        %v251 = vrot.slane %v250, 1
        %vm252 = vcmp.lt.s32.totalorder %v250, %v251
        %v253 = vsel %vm252, %v250, %v251
        %s254 = vtos %v253
        %s255 = sshra.s32 %s254, 16
        %s256 = sand.u32 %s254, 65535
        %v257 = vstv %s254
        %vm258 = vcmp.eq.s32.totalorder %v177, %v257
        %v259 = vsel %vm258, -inf, %v218
        %vm260 = vcmp.eq.s32.totalorder %v175, 0
        %vm261 = vmand %vm260, %vm178
        %s262 = scvt.s32.f32 %s256
        %v263 = vstv %s262
        %v264 = vsel %vm261, %v263, 0.0
        %vm265 = vmand %vm260, %vm183
        %s266 = scvt.s32.f32 %s255
        %v267 = vstv %s266
        %v268 = vsel %vm265, %v267, %v264
        %vm269 = vmand %vm260, %vm188
        %v270 = vsel %vm269, %v228, %v268
        %271 = vmax.xlane.f32.xlu0 %v259
        %v272 = vpop.xlane.xlu0 %271
        %v273 = vrot.slane %v272, 4
        %v274 = vmax.f32 %v272, %v273
        %v275 = vrot.slane %v274, 2
        %v276 = vmax.f32 %v274, %v275
        %v277 = vrot.slane %v276, 1
        %v278 = vmax.f32 %v276, %v277
        %s279 = vtos %v278
        %v280 = vstv %s279
        %vm281 = vcmp.eq.f32.partialorder %v259, %v280
        %v282 = vsel %vm281, %v177, 2147483647
        %v283 = vand.u32 %v282, 65535
        %v284 = vshra.s32 %v282, 16
        %v285 = vcvt.s32.f32 %v283
        %v286 = vcvt.s32.f32 %v284
        %287 = vmin.xlane.f32.xlu0 %v286
        %v288 = vpop.xlane.xlu0 %287
        %vm289 = vcmp.eq.f32.partialorder %v286, %v288
        %v290 = vsel %vm289, %v285, inf
        %291 = vmin.xlane.f32.xlu0 %v290
        %v292 = vpop.xlane.xlu0 %291
        %v293 = vcvt.f32.s32 %v292
        %v294 = vcvt.f32.s32 %v288
        %v295 = vshll.u32 %v294, 16
        %v296 = vadd.s32 %v295, %v293
        %v297 = vrot.slane %v296, 4
        %vm298 = vcmp.lt.s32.totalorder %v296, %v297
        %v299 = vsel %vm298, %v296, %v297
        %v300 = vrot.slane %v299, 2
        %vm301 = vcmp.lt.s32.totalorder %v299, %v300
        %v302 = vsel %vm301, %v299, %v300
        %v303 = vrot.slane %v302, 1
        %vm304 = vcmp.lt.s32.totalorder %v302, %v303
        %v305 = vsel %vm304, %v302, %v303
        %s306 = vtos %v305
        %s307 = sshra.s32 %s306, 16
        %s308 = sand.u32 %s306, 65535
        %v309 = vstv %s306
        %vm310 = vcmp.eq.s32.totalorder %v177, %v309
        %v311 = vsel %vm310, -inf, %v259
        %vm312 = vcmp.eq.s32.totalorder %v175, 1
        %vm313 = vmand %vm312, %vm178
        %s314 = scvt.s32.f32 %s308
        %v315 = vstv %s314
        %v316 = vsel %vm313, %v315, %v270
        %vm317 = vmand %vm312, %vm183
        %s318 = scvt.s32.f32 %s307
        %v319 = vstv %s318
        %v320 = vsel %vm317, %v319, %v316
        %vm321 = vmand %vm312, %vm188
        %v322 = vsel %vm321, %v280, %v320
        %323 = vmax.xlane.f32.xlu0 %v311
        %v324 = vpop.xlane.xlu0 %323
        %v325 = vrot.slane %v324, 4
        %v326 = vmax.f32 %v324, %v325
        %v327 = vrot.slane %v326, 2
        %v328 = vmax.f32 %v326, %v327
        %v329 = vrot.slane %v328, 1
        %v330 = vmax.f32 %v328, %v329
        %s331 = vtos %v330
        %v332 = vstv %s331
        %vm333 = vcmp.eq.f32.partialorder %v311, %v332
        %v334 = vsel %vm333, %v177, 2147483647
        %v335 = vand.u32 %v334, 65535
        %v336 = vshra.s32 %v334, 16
        %v337 = vcvt.s32.f32 %v335
        %v338 = vcvt.s32.f32 %v336
        %339 = vmin.xlane.f32.xlu0 %v338
        %v340 = vpop.xlane.xlu0 %339
        %vm341 = vcmp.eq.f32.partialorder %v338, %v340
        %v342 = vsel %vm341, %v337, inf
        %343 = vmin.xlane.f32.xlu0 %v342
        %v344 = vpop.xlane.xlu0 %343
        %v345 = vcvt.f32.s32 %v344
        %v346 = vcvt.f32.s32 %v340
        %v347 = vshll.u32 %v346, 16
        %v348 = vadd.s32 %v347, %v345
        %v349 = vrot.slane %v348, 4
        %vm350 = vcmp.lt.s32.totalorder %v348, %v349
        %v351 = vsel %vm350, %v348, %v349
        %v352 = vrot.slane %v351, 2
        %vm353 = vcmp.lt.s32.totalorder %v351, %v352
        %v354 = vsel %vm353, %v351, %v352
        %v355 = vrot.slane %v354, 1
        %vm356 = vcmp.lt.s32.totalorder %v354, %v355
        %v357 = vsel %vm356, %v354, %v355
        %s358 = vtos %v357
        %s359 = sshra.s32 %s358, 16
        %s360 = sand.u32 %s358, 65535
        %v361 = vstv %s358
        %vm362 = vcmp.eq.s32.totalorder %v177, %v361
        %v363 = vsel %vm362, -inf, %v311
        %vm364 = vcmp.eq.s32.totalorder %v175, 2
        %vm365 = vmand %vm364, %vm178
        %s366 = scvt.s32.f32 %s360
        %v367 = vstv %s366
        %v368 = vsel %vm365, %v367, %v322
        %vm369 = vmand %vm364, %vm183
        %s370 = scvt.s32.f32 %s359
        %v371 = vstv %s370
        %v372 = vsel %vm369, %v371, %v368
        %vm373 = vmand %vm364, %vm188
        %v374 = vsel %vm373, %v332, %v372
        %375 = vmax.xlane.f32.xlu0 %v363
        %v376 = vpop.xlane.xlu0 %375
        %v377 = vrot.slane %v376, 4
        %v378 = vmax.f32 %v376, %v377
        %v379 = vrot.slane %v378, 2
        %v380 = vmax.f32 %v378, %v379
        %v381 = vrot.slane %v380, 1
        %v382 = vmax.f32 %v380, %v381
        %s383 = vtos %v382
        %v384 = vstv %s383
        %vm385 = vcmp.eq.f32.partialorder %v363, %v384
        %v386 = vsel %vm385, %v177, 2147483647
        %v387 = vand.u32 %v386, 65535
        %v388 = vshra.s32 %v386, 16
        %v389 = vcvt.s32.f32 %v387
        %v390 = vcvt.s32.f32 %v388
        %391 = vmin.xlane.f32.xlu0 %v390
        %v392 = vpop.xlane.xlu0 %391
        %vm393 = vcmp.eq.f32.partialorder %v390, %v392
        %v394 = vsel %vm393, %v389, inf
        %395 = vmin.xlane.f32.xlu0 %v394
        %v396 = vpop.xlane.xlu0 %395
        %v397 = vcvt.f32.s32 %v396
        %v398 = vcvt.f32.s32 %v392
        %v399 = vshll.u32 %v398, 16
        %v400 = vadd.s32 %v399, %v397
        %v401 = vrot.slane %v400, 4
        %vm402 = vcmp.lt.s32.totalorder %v400, %v401
        %v403 = vsel %vm402, %v400, %v401
        %v404 = vrot.slane %v403, 2
        %vm405 = vcmp.lt.s32.totalorder %v403, %v404
        %v406 = vsel %vm405, %v403, %v404
        %v407 = vrot.slane %v406, 1
        %vm408 = vcmp.lt.s32.totalorder %v406, %v407
        %v409 = vsel %vm408, %v406, %v407
        %s410 = vtos %v409
        %s411 = sshra.s32 %s410, 16
        %s412 = sand.u32 %s410, 65535
        %v413 = vstv %s410
        %vm414 = vcmp.eq.s32.totalorder %v177, %v413
        %v415 = vsel %vm414, -inf, %v363
        %vm416 = vcmp.eq.s32.totalorder %v175, 3
        %vm417 = vmand %vm416, %vm178
        %s418 = scvt.s32.f32 %s412
        %v419 = vstv %s418
        %v420 = vsel %vm417, %v419, %v374
        %vm421 = vmand %vm416, %vm183
        %s422 = scvt.s32.f32 %s411
        %v423 = vstv %s422
        %v424 = vsel %vm421, %v423, %v420
        %vm425 = vmand %vm416, %vm188
        %v426 = vsel %vm425, %v384, %v424
        %427 = vmax.xlane.f32.xlu0 %v415
        %v428 = vpop.xlane.xlu0 %427
        %v429 = vrot.slane %v428, 4
        %v430 = vmax.f32 %v428, %v429
        %v431 = vrot.slane %v430, 2
        %v432 = vmax.f32 %v430, %v431
        %v433 = vrot.slane %v432, 1
        %v434 = vmax.f32 %v432, %v433
        %s435 = vtos %v434
        %v436 = vstv %s435
        %vm437 = vcmp.eq.f32.partialorder %v415, %v436
        %v438 = vsel %vm437, %v177, 2147483647
        %v439 = vand.u32 %v438, 65535
        %v440 = vshra.s32 %v438, 16
        %v441 = vcvt.s32.f32 %v439
        %v442 = vcvt.s32.f32 %v440
        %443 = vmin.xlane.f32.xlu0 %v442
        %v444 = vpop.xlane.xlu0 %443
        %vm445 = vcmp.eq.f32.partialorder %v442, %v444
        %v446 = vsel %vm445, %v441, inf
        %447 = vmin.xlane.f32.xlu0 %v446
        %v448 = vpop.xlane.xlu0 %447
        %v449 = vcvt.f32.s32 %v448
        %v450 = vcvt.f32.s32 %v444
        %v451 = vshll.u32 %v450, 16
        %v452 = vadd.s32 %v451, %v449
        %v453 = vrot.slane %v452, 4
        %vm454 = vcmp.lt.s32.totalorder %v452, %v453
        %v455 = vsel %vm454, %v452, %v453
        %v456 = vrot.slane %v455, 2
        %vm457 = vcmp.lt.s32.totalorder %v455, %v456
        %v458 = vsel %vm457, %v455, %v456
        %v459 = vrot.slane %v458, 1
        %vm460 = vcmp.lt.s32.totalorder %v458, %v459
        %v461 = vsel %vm460, %v458, %v459
        %s462 = vtos %v461
        %s463 = sshra.s32 %s462, 16
        %s464 = sand.u32 %s462, 65535
        %v465 = vstv %s462
        %vm466 = vcmp.eq.s32.totalorder %v177, %v465
        %v467 = vsel %vm466, -inf, %v415
        %vm468 = vcmp.eq.s32.totalorder %v175, 4
        %vm469 = vmand %vm468, %vm178
        %s470 = scvt.s32.f32 %s464
        %v471 = vstv %s470
        %v472 = vsel %vm469, %v471, %v426
        %vm473 = vmand %vm468, %vm183
        %s474 = scvt.s32.f32 %s463
        %v475 = vstv %s474
        %v476 = vsel %vm473, %v475, %v472
        %vm477 = vmand %vm468, %vm188
        %v478 = vsel %vm477, %v436, %v476
        %479 = vmax.xlane.f32.xlu0 %v467
        %v480 = vpop.xlane.xlu0 %479
        %v481 = vrot.slane %v480, 4
        %v482 = vmax.f32 %v480, %v481
        %v483 = vrot.slane %v482, 2
        %v484 = vmax.f32 %v482, %v483
        %v485 = vrot.slane %v484, 1
        %v486 = vmax.f32 %v484, %v485
        %s487 = vtos %v486
        %v488 = vstv %s487
        %vm489 = vcmp.eq.f32.partialorder %v467, %v488
        %v490 = vsel %vm489, %v177, 2147483647
        %v491 = vand.u32 %v490, 65535
        %v492 = vshra.s32 %v490, 16
        %v493 = vcvt.s32.f32 %v491
        %v494 = vcvt.s32.f32 %v492
        %495 = vmin.xlane.f32.xlu0 %v494
        %v496 = vpop.xlane.xlu0 %495
        %vm497 = vcmp.eq.f32.partialorder %v494, %v496
        %v498 = vsel %vm497, %v493, inf
        %499 = vmin.xlane.f32.xlu0 %v498
        %v500 = vpop.xlane.xlu0 %499
        %v501 = vcvt.f32.s32 %v500
        %v502 = vcvt.f32.s32 %v496
        %v503 = vshll.u32 %v502, 16
        %v504 = vadd.s32 %v503, %v501
        %v505 = vrot.slane %v504, 4
        %vm506 = vcmp.lt.s32.totalorder %v504, %v505
        %v507 = vsel %vm506, %v504, %v505
        %v508 = vrot.slane %v507, 2
        %vm509 = vcmp.lt.s32.totalorder %v507, %v508
        %v510 = vsel %vm509, %v507, %v508
        %v511 = vrot.slane %v510, 1
        %vm512 = vcmp.lt.s32.totalorder %v510, %v511
        %v513 = vsel %vm512, %v510, %v511
        %s514 = vtos %v513
        %s515 = sshra.s32 %s514, 16
        %s516 = sand.u32 %s514, 65535
        %v517 = vstv %s514
        %vm518 = vcmp.eq.s32.totalorder %v177, %v517
        %v519 = vsel %vm518, -inf, %v467
        %vm520 = vcmp.eq.s32.totalorder %v175, 5
        %vm521 = vmand %vm520, %vm178
        %s522 = scvt.s32.f32 %s516
        %v523 = vstv %s522
        %v524 = vsel %vm521, %v523, %v478
        %vm525 = vmand %vm520, %vm183
        %s526 = scvt.s32.f32 %s515
        %v527 = vstv %s526
        %v528 = vsel %vm525, %v527, %v524
        %vm529 = vmand %vm520, %vm188
        %v530 = vsel %vm529, %v488, %v528
        %531 = vmax.xlane.f32.xlu0 %v519
        %v532 = vpop.xlane.xlu0 %531
        %v533 = vrot.slane %v532, 4
        %v534 = vmax.f32 %v532, %v533
        %v535 = vrot.slane %v534, 2
        %v536 = vmax.f32 %v534, %v535
        %v537 = vrot.slane %v536, 1
        %v538 = vmax.f32 %v536, %v537
        %s539 = vtos %v538
        %v540 = vstv %s539
        %vm541 = vcmp.eq.f32.partialorder %v519, %v540
        %v542 = vsel %vm541, %v177, 2147483647
        %v543 = vand.u32 %v542, 65535
        %v544 = vshra.s32 %v542, 16
        %v545 = vcvt.s32.f32 %v543
        %v546 = vcvt.s32.f32 %v544
        %547 = vmin.xlane.f32.xlu0 %v546
        %v548 = vpop.xlane.xlu0 %547
        %vm549 = vcmp.eq.f32.partialorder %v546, %v548
        %v550 = vsel %vm549, %v545, inf
        %551 = vmin.xlane.f32.xlu0 %v550
        %v552 = vpop.xlane.xlu0 %551
        %v553 = vcvt.f32.s32 %v552
        %v554 = vcvt.f32.s32 %v548
        %v555 = vshll.u32 %v554, 16
        %v556 = vadd.s32 %v555, %v553
        %v557 = vrot.slane %v556, 4
        %vm558 = vcmp.lt.s32.totalorder %v556, %v557
        %v559 = vsel %vm558, %v556, %v557
        %v560 = vrot.slane %v559, 2
        %vm561 = vcmp.lt.s32.totalorder %v559, %v560
        %v562 = vsel %vm561, %v559, %v560
        %v563 = vrot.slane %v562, 1
        %vm564 = vcmp.lt.s32.totalorder %v562, %v563
        %v565 = vsel %vm564, %v562, %v563
        %s566 = vtos %v565
        %s567 = sshra.s32 %s566, 16
        %s568 = sand.u32 %s566, 65535
        %v569 = vstv %s566
        %vm570 = vcmp.eq.s32.totalorder %v177, %v569
        %v571 = vsel %vm570, -inf, %v519
        %vm572 = vcmp.eq.s32.totalorder %v175, 6
        %vm573 = vmand %vm572, %vm178
        %s574 = scvt.s32.f32 %s568
        %v575 = vstv %s574
        %v576 = vsel %vm573, %v575, %v530
        %vm577 = vmand %vm572, %vm183
        %s578 = scvt.s32.f32 %s567
        %v579 = vstv %s578
        %v580 = vsel %vm577, %v579, %v576
        %vm581 = vmand %vm572, %vm188
        %v582 = vsel %vm581, %v540, %v580
        %583 = vmax.xlane.f32.xlu0 %v571
        %v584 = vpop.xlane.xlu0 %583
        %v585 = vrot.slane %v584, 4
        %v586 = vmax.f32 %v584, %v585
        %v587 = vrot.slane %v586, 2
        %v588 = vmax.f32 %v586, %v587
        %v589 = vrot.slane %v588, 1
        %v590 = vmax.f32 %v588, %v589
        %s591 = vtos %v590
        %v592 = vstv %s591
        %vm593 = vcmp.eq.f32.partialorder %v571, %v592
        %v594 = vsel %vm593, %v177, 2147483647
        %v595 = vand.u32 %v594, 65535
        %v596 = vshra.s32 %v594, 16
        %v597 = vcvt.s32.f32 %v595
        %v598 = vcvt.s32.f32 %v596
        %599 = vmin.xlane.f32.xlu0 %v598
        %v600 = vpop.xlane.xlu0 %599
        %vm601 = vcmp.eq.f32.partialorder %v598, %v600
        %v602 = vsel %vm601, %v597, inf
        %603 = vmin.xlane.f32.xlu0 %v602
        %v604 = vpop.xlane.xlu0 %603
        %v605 = vcvt.f32.s32 %v604
        %v606 = vcvt.f32.s32 %v600
        %v607 = vshll.u32 %v606, 16
        %v608 = vadd.s32 %v607, %v605
        %v609 = vrot.slane %v608, 4
        %vm610 = vcmp.lt.s32.totalorder %v608, %v609
        %v611 = vsel %vm610, %v608, %v609
        %v612 = vrot.slane %v611, 2
        %vm613 = vcmp.lt.s32.totalorder %v611, %v612
        %v614 = vsel %vm613, %v611, %v612
        %v615 = vrot.slane %v614, 1
        %vm616 = vcmp.lt.s32.totalorder %v614, %v615
        %v617 = vsel %vm616, %v614, %v615
        %s618 = vtos %v617
        %s619 = sshra.s32 %s618, 16
        %s620 = sand.u32 %s618, 65535
        %vm621 = vcmp.eq.s32.totalorder %v175, 7
        %vm622 = vmand %vm621, %vm178
        %s623 = scvt.s32.f32 %s620
        %v624 = vstv %s623
        %v625 = vsel %vm622, %v624, %v582
        %vm626 = vmand %vm621, %vm183
        %s627 = scvt.s32.f32 %s619
        %v628 = vstv %s627
        %v629 = vsel %vm626, %v628, %v625
        %vm630 = vmand %vm621, %vm188
        %v631 = vsel %vm630, %v592, %v629
        %632 = vst [vmem:[%s170] sm:$0xff] %v631
        %s633 = sand.u32 %s75, 1
        %s634 = scalar_lea.sflag [#allocation4], %s633
        %s635 = sand.u32 %s75, 1
        %s636 = smul.addr %s635, 8
        %s637 = scalar_lea.vmem [#allocation7], %s636
        // Predicated region
        $region37: #{tpu_custom_call.1} parent=27 // pred_check
          %p638 = pneg %p85
        $region38: #{tpu_custom_call.1} parent=27 // pred_check_branch
          %640 = sbr.rel (%p638) target = $region40
        $region39: #{tpu_custom_call.1} parent=27 // pred_region
          %s642 = ssub.s32 128, 128
          %643 = vsyncadd %s634, %s642
          %s644 = smul.addr %s20, 128
          %s645 = scalar_lea.hbm %s2, %s644
          %s647 = sshll.u32 %s637, 4
          %s648 = int_to_ptr.vmem [resolvable:$true] %s647
          %650 = dma.vmem_to_hbm [thread:$0]  %s648, 128, %s645, %s634
        $region40: #{tpu_custom_call.1} parent=27 // pred_fallthru
          _
      $region28: #{tpu_custom_call.1} parent=5 // pred_fallthru
        _
      %p651 = scmp.le.s32.totalorder 2, %s15
      // Predicated region
      $region41: #{tpu_custom_call.1} parent=5 // pred_check
        %p652 = pneg %p651
      $region42: #{tpu_custom_call.1} parent=5 // pred_check_branch
        %654 = sbr.rel (%p652) target = $region44
      $region43: #{tpu_custom_call.1} parent=5 // pred_region
        %s655 = ssub.s32 %s15, 2
        // Predicated region
        $region45: #{tpu_custom_call.1} parent=43 // pred_check
          %p656 = pneg %p91
        $region46: #{tpu_custom_call.1} parent=43 // pred_check_branch
          %658 = sbr.rel (%p656) target = $region48
        $region47: #{tpu_custom_call.1} parent=43 // pred_region
          %s659 = sand.u32 %s76, 1
          %s660 = scalar_lea.sflag [#allocation4], %s659
          %s661 = sand.u32 %s76, 1
          %s662 = smul.addr %s661, 8
          %s663 = scalar_lea.vmem [#allocation7], %s662
          %664 = dma.done %s660, 128
        $region48: #{tpu_custom_call.1} parent=43 // pred_fallthru
          _
      $region44: #{tpu_custom_call.1} parent=5 // pred_fallthru
        _
    $region6: #{tpu_custom_call.1} parent=1 // loop_footer
      %s19 = sadd.s32 1, %s15
    $region7: #{tpu_custom_call.1} parent=1 // loop_footer_branch
      %14 = sbr.rel target = $region3
    $region8: #{tpu_custom_call.1} parent=1 // loop_exit
      _
    %665 = vsyncpa [#allocation3], 1
    %s666 = scalar_lea.sflag [#allocation3], 1
    %667 = vsyncpa %s666, 1
    %668 = vsyncpa [#allocation4], 1
    %s669 = scalar_lea.sflag [#allocation4], 1
    %670 = vsyncpa %s669, 1
    %671 = vsyncpa [#allocation5], 1
    %s672 = scalar_lea.sflag [#allocation5], 1
    %673 = vsyncpa %s672, 1

</llo_original>
